<compile_context>
chip_gen: v6e
topology: v6e:2x2x1
jax: 0.10.0
libtpu: 0.0.40
codegen_flags: <defaults>
</compile_context>

<pallas_src>
import functools

import jax
import jax.numpy as jnp
from jax import lax
from jax.experimental import pallas as pl
from jax.experimental.pallas import tpu as pltpu


def _hash_u32(x):
    """lowbias32 integer hash: a few cheap VPU ops per element."""
    x = x ^ (x >> jnp.uint32(16))
    x = x * jnp.uint32(0x7FEB352D)
    x = x ^ (x >> jnp.uint32(15))
    x = x * jnp.uint32(0x846CA68B)
    x = x ^ (x >> jnp.uint32(16))
    return x


def _residual_kernel(seed_ref, x_ref, w_ref, b_ref, o_ref, *, dropout_p, tm, d):
    """Fused: y = x @ W + b ; y = dropout(y) ; out = y + x   (one M-tile)."""
    x = x_ref[...]

    # MXU matmul in native operand dtype, f32 accumulator.
    y = jnp.dot(x, w_ref[...], preferred_element_type=jnp.float32)
    y = y + b_ref[...].astype(jnp.float32)

    if dropout_p > 0.0:
        keep_prob = 1.0 - dropout_p
        # Counter-based PRNG: hash(global element index ^ mixed seed).
        pid = pl.program_id(0).astype(jnp.uint32)
        rows = lax.broadcasted_iota(jnp.int32, (tm, d), 0).astype(jnp.uint32)
        cols = lax.broadcasted_iota(jnp.int32, (tm, d), 1).astype(jnp.uint32)
        gidx = (pid * jnp.uint32(tm) + rows) * jnp.uint32(d) + cols
        seed = seed_ref[0].astype(jnp.uint32) * jnp.uint32(0x9E3779B1)
        bits = _hash_u32(gidx ^ seed)
        # Direct integer-threshold compare (no uint->float convert).
        thr = jnp.uint32(min(int(keep_prob * (1 << 32)), (1 << 32) - 1))
        keep = bits < thr
        y = jnp.where(keep, y * jnp.float32(1.0 / keep_prob), jnp.float32(0.0))

    # Residual add with args[0].
    o_ref[...] = (y + x.astype(jnp.float32)).astype(o_ref.dtype)


def residual_forward(x, w, b, seed, dropout_p, *, tm_max=512):
    """x: [..., D]; w: [D, D] (torch weight.T); b: [1, D]; seed: python int."""
    orig_shape = x.shape
    D = orig_shape[-1]
    x2 = x.reshape(-1, D)
    M = x2.shape[0]

    # Tile over M.  Largest power-of-two tile <= tm_max (>= 8 for sublane
    # alignment); pad M so the grid divides evenly, drop padded rows after.
    TM = max(8, min(tm_max, pl.next_power_of_2(M)))
    n_tiles = pl.cdiv(M, TM)
    M_pad = n_tiles * TM
    if M_pad != M:
        x2 = jnp.pad(x2, ((0, M_pad - M), (0, 0)))

    itemsize = jnp.dtype(x.dtype).itemsize
    cost = pl.CostEstimate(
        flops=2 * M_pad * D * D,
        bytes_accessed=(2 * M_pad * D + D * D + D) * itemsize,
        transcendentals=0,
    )

    # VMEM budget: double-buffered (TM, D) x & out tiles + resident W + b.
    needed = (2 * 2 * TM * D) * itemsize + (D * D + D) * jnp.dtype(w.dtype).itemsize
    vmem_limit = int(min(max(2 * needed, 32 << 20), 64 << 20))  # safe on v5e/v6e/v7x

    kernel = functools.partial(
        _residual_kernel, dropout_p=float(dropout_p), tm=TM, d=D)

    out = pl.pallas_call(
        kernel,
        out_shape=jax.ShapeDtypeStruct((M_pad, D), x.dtype),
        grid_spec=pltpu.PrefetchScalarGridSpec(
            num_scalar_prefetch=1,              # seed lands in SMEM
            grid=(n_tiles,),
            in_specs=[
                pl.BlockSpec((TM, D), lambda i, seed: (i, 0)),   # x tile
                pl.BlockSpec((D, D), lambda i, seed: (0, 0)),    # W resident
                pl.BlockSpec((1, D), lambda i, seed: (0, 0)),    # b resident
            ],
            out_specs=pl.BlockSpec((TM, D), lambda i, seed: (i, 0)),
        ),
        compiler_params=pltpu.CompilerParams(
            dimension_semantics=("parallel",),
            vmem_limit_bytes=vmem_limit,
        ),
        cost_estimate=cost,
    )(jnp.asarray([seed], dtype=jnp.int32), x2, w, b)

    if M_pad != M:
        out = out[:M]
    return out.reshape(orig_shape)


def _reference(x, w, b, seed, dropout_p):
    """Pure-JAX reference reproducing the kernel's deterministic dropout mask."""
    D = x.shape[-1]
    x2 = x.reshape(-1, D).astype(jnp.float32)
    y = x2 @ w.astype(jnp.float32) + b.astype(jnp.float32)
    if dropout_p > 0.0:
        keep_prob = 1.0 - dropout_p
        M = x2.shape[0]
        rows = jnp.arange(M, dtype=jnp.uint32)[:, None]
        cols = jnp.arange(D, dtype=jnp.uint32)[None, :]
        gidx = rows * jnp.uint32(D) + cols        # == (pid*TM + lrow)*D + col
        bits = _hash_u32(gidx ^ (jnp.uint32(seed) * jnp.uint32(0x9E3779B1)))
        thr = jnp.uint32(min(int(keep_prob * (1 << 32)), (1 << 32) - 1))
        y = jnp.where(bits < thr, y * (1.0 / keep_prob), 0.0)
    return (y + x2).reshape(x.shape).astype(x.dtype)


if __name__ == "__main__":
    B, S, D = 2, 8, 32
    key = jax.random.PRNGKey(0)
    kx, kw, kb = jax.random.split(key, 3)

    x = jax.random.normal(kx, (B, S, D), dtype=jnp.float32)
    # deterministic "Linear(D, D)" params (w is torch weight.T)
    w = jax.random.normal(kw, (D, D), dtype=jnp.float32) * (1.0 / jnp.sqrt(D))
    b = jax.random.normal(kb, (1, D), dtype=jnp.float32) * 0.1

    # 1) p = 0: kernel must match the pure-JAX Linear + residual exactly.
    out_p0 = residual_forward(x, w, b, seed=0, dropout_p=0.0)
    jax.block_until_ready(out_p0)
    ref_p0 = _reference(x, w, b, seed=0, dropout_p=0.0)
    assert jnp.allclose(out_p0, ref_p0, atol=1e-5, rtol=1e-5), "p=0 mismatch"

    # 2) p = 0.1 training-mode dropout: deterministic hash mask, so the
    #    reference reproduces the exact same mask.
    out_p = residual_forward(x, w, b, seed=1234, dropout_p=0.1)
    jax.block_until_ready(out_p)
    ref_p = _reference(x, w, b, seed=1234, dropout_p=0.1)
    assert jnp.allclose(out_p, ref_p, atol=1e-5, rtol=1e-5), "dropout mismatch"

    print("KERNEL_OK")
</pallas_src>

<mosaic_0001>
module attributes {stable_mosaic.version = 11 : i64} {
  func.func @_residual_kernel(%arg0: i32, %arg1: memref<1xi32, #tpu.memory_space<smem>>, %arg2: memref<16x32xf32, #tpu.memory_space<vmem>>, %arg3: memref<32x32xf32, #tpu.memory_space<vmem>>, %arg4: memref<1x32xf32, #tpu.memory_space<vmem>>, %arg5: memref<16x32xf32, #tpu.memory_space<vmem>>) attributes {dimension_semantics = [#tpu.dimension_semantics<parallel>], iteration_bounds = array<i64: 1>, scalar_prefetch = 1 : i64, scratch_operands = 0 : i64, tpu.core_type = #tpu.core_type<tc>, window_params = [{transform_indices = @transform_0, window_bounds = array<i64: 16, 32>}, {pipeline_mode = #tpu.pipeline_mode<synchronous>, transform_indices = @transform_1, window_bounds = array<i64: 32, 32>}, {pipeline_mode = #tpu.pipeline_mode<synchronous>, transform_indices = @transform_2, window_bounds = array<i64: 1, 32>}, {transform_indices = @transform_3, window_bounds = array<i64: 16, 32>}]} {
    %c0 = arith.constant 0 : index
    %c0_0 = arith.constant 0 : index
    %0 = vector.load %arg2[%c0, %c0_0] : memref<16x32xf32, #tpu.memory_space<vmem>>, vector<16x32xf32>
    %c0_1 = arith.constant 0 : index
    %c0_2 = arith.constant 0 : index
    %1 = vector.load %arg3[%c0_1, %c0_2] : memref<32x32xf32, #tpu.memory_space<vmem>>, vector<32x32xf32>
    %cst = arith.constant dense<0.000000e+00> : vector<16x32xf32>
    %2 = tpu.matmul %0, %1, %cst {dimension_numbers = #tpu.dot_dimension_numbers<[1], [0], [0], [1], [0, 0, 1, 1], [], []>} : vector<16x32xf32>, vector<32x32xf32>, vector<16x32xf32> -> vector<16x32xf32>
    %c0_3 = arith.constant 0 : index
    %c0_4 = arith.constant 0 : index
    %3 = vector.load %arg4[%c0_3, %c0_4] : memref<1x32xf32, #tpu.memory_space<vmem>>, vector<1x32xf32>
    %4 = vector.broadcast %3 : vector<1x32xf32> to vector<16x32xf32>
    %5 = arith.addf %2, %4 : vector<16x32xf32>
    %6 = arith.addf %5, %0 : vector<16x32xf32>
    %c0_5 = arith.constant 0 : index
    %c0_6 = arith.constant 0 : index
    %7 = vector.load %arg5[%c0_5, %c0_6] : memref<16x32xf32, #tpu.memory_space<vmem>>, vector<16x32xf32>
    tpu.vector_store %arg5[%c0_5, %c0_6], %6 {strides = array<i32>} : memref<16x32xf32, #tpu.memory_space<vmem>>, vector<16x32xf32>,
    return
  }
  func.func @transform_0(%arg0: i32, %arg1: memref<1xi32, #tpu.memory_space<smem>>) -> (i32, i32) {
    %c0_i32 = arith.constant 0 : i32
    %c0_i32_0 = arith.constant 0 : i32
    return %arg0, %c0_i32 : i32, i32
  }
  func.func @transform_1(%arg0: i32, %arg1: memref<1xi32, #tpu.memory_space<smem>>) -> (i32, i32) {
    %c0_i32 = arith.constant 0 : i32
    %c0_i32_0 = arith.constant 0 : i32
    %c0_i32_1 = arith.constant 0 : i32
    return %c0_i32, %c0_i32_0 : i32, i32
  }
  func.func @transform_2(%arg0: i32, %arg1: memref<1xi32, #tpu.memory_space<smem>>) -> (i32, i32) {
    %c0_i32 = arith.constant 0 : i32
    %c0_i32_0 = arith.constant 0 : i32
    %c0_i32_1 = arith.constant 0 : i32
    return %c0_i32, %c0_i32_0 : i32, i32
  }
  func.func @transform_3(%arg0: i32, %arg1: memref<1xi32, #tpu.memory_space<smem>>) -> (i32, i32) {
    %c0_i32 = arith.constant 0 : i32
    %c0_i32_0 = arith.constant 0 : i32
    return %arg0, %c0_i32 : i32, i32
  }
}

</mosaic_0001>

<llo_original>
// kernel: tpu_custom_call.1
$region0: #{tpu_custom_call.1}
  #allocation0 [shape = 'u32[]', space=smem, size = 0x4, offset = 0x4, fixed_abs, tag = 'smem constant byte address 0x4 - core index']
  #allocation1 [shape = 'u32[144,128]{1,0:T(1,128)}', space=vmem, size = 0x12000, scoped, tag = 'internal scratch']
  #allocation2 [shape = 's32[1]{0}', space=sflag, size = 0x4, scoped, tag = 'scoped memory for tpu_custom_call.1']
  #allocation3 [shape = 's32[1]{0:T(128)S(6)}', space=smem, size = 0x200, scoped, tag = 'prefetched SMEM operand 0']
  %s0 = inlined_call_operand.<no memory space> [shape: s32[1], index: 0, kind: input, shape index: {}]
  %s1 = inlined_call_operand.hbm [shape: f32[16,32], index: 1, kind: input, shape index: {}]
  %s2 = inlined_call_operand.hbm [shape: f32[32,32], index: 2, kind: input, shape index: {}]
  %s3 = inlined_call_operand.vmem [shape: f32[1,32], index: 3, kind: input, shape index: {}]
  %s4 = inlined_call_operand.hbm [shape: f32[16,32], index: 4, kind: output, shape index: {}]
  %s5 = sld [smem:[#allocation0]]
  $region30: #{tpu_custom_call.1} parent=0
    _
  %s7 = ssub.s32 1, %s5
  %s8 = scalar_select 0, %s7, %s5
  %9 = sst [smem:[#allocation3]] %s0
  $region1: #{tpu_custom_call.1} parent=0
    #allocation4 [shape = 'u8[8192]{0}', space=vmem, size = 0x2000, scoped, tag = 'input window, operand 1, single buffered']
    #allocation5 [shape = 's32[1]{0}', space=sflag, size = 0x4, scoped, tag = 'scoped memory for tpu_custom_call.1']
    #allocation6 [shape = 's32[1]{0}', space=sflag, size = 0x4, scoped, tag = 'scoped memory for tpu_custom_call.1']
    #allocation7 [shape = 'u8[16384]{0}', space=vmem, size = 0x4000, scoped, tag = 'input window, operand 2, single buffered']
    #allocation8 [shape = 's32[1]{0}', space=sflag, size = 0x4, scoped, tag = 'scoped memory for tpu_custom_call.1']
    #allocation9 [shape = 'u8[8192]{0}', space=vmem, size = 0x2000, scoped, tag = 'output window, operand 0, single buffered']
    %10 = vsyncpa [#allocation5], 0
    %11 = vsyncpa [#allocation8], 0
    %12 = vsyncpa [#allocation6], 0
    // Predicated region
    $region2: #{tpu_custom_call.1} parent=1 // pred_check
      _
    $region3: #{tpu_custom_call.1} parent=1 // pred_check_branch
      %14 = sbr.rel (0) target = $region5
    $region4: #{tpu_custom_call.1} parent=1 // pred_region
      %s16 = ssub.s32 256, 256
      %17 = vsyncadd [#allocation5], %s16
      %s18 = sshll.u32 [#allocation4], 4
      %s19 = int_to_ptr.vmem [resolvable:$true] %s18
      %24 = dma.hbm_to_vmem [thread:$0]  %s1, 256, %s19, [#allocation5], 128, 128, 8
    $region5: #{tpu_custom_call.1} parent=1 // pred_fallthru
      _
    // Predicated region
    $region6: #{tpu_custom_call.1} parent=1 // pred_check
      _
    $region7: #{tpu_custom_call.1} parent=1 // pred_check_branch
      %26 = sbr.rel (0) target = $region9
    $region8: #{tpu_custom_call.1} parent=1 // pred_region
      %s28 = ssub.s32 512, 512
      %29 = vsyncadd [#allocation8], %s28
      %s30 = sshll.u32 [#allocation7], 4
      %s31 = int_to_ptr.vmem [resolvable:$true] %s30
      %36 = dma.hbm_to_vmem [thread:$0]  %s2, 512, %s31, [#allocation8], 128, 128, 8
    $region9: #{tpu_custom_call.1} parent=1 // pred_fallthru
      _
    // Predicated region
    $region10: #{tpu_custom_call.1} parent=1 // pred_check
      _
    $region11: #{tpu_custom_call.1} parent=1 // pred_check_branch
      %38 = sbr.rel (0) target = $region13
    $region12: #{tpu_custom_call.1} parent=1 // pred_region
      _
    $region13: #{tpu_custom_call.1} parent=1 // pred_fallthru
      _
    // Predicated region
    $region14: #{tpu_custom_call.1} parent=1 // pred_check
      _
    $region15: #{tpu_custom_call.1} parent=1 // pred_check_branch
      %40 = sbr.rel (0) target = $region17
    $region16: #{tpu_custom_call.1} parent=1 // pred_region
      %41 = dma.done [#allocation5], 256
    $region17: #{tpu_custom_call.1} parent=1 // pred_fallthru
      _
    // Predicated region
    $region18: #{tpu_custom_call.1} parent=1 // pred_check
      _
    $region19: #{tpu_custom_call.1} parent=1 // pred_check_branch
      %43 = sbr.rel (0) target = $region21
    $region20: #{tpu_custom_call.1} parent=1 // pred_region
      %44 = dma.done [#allocation8], 512
    $region21: #{tpu_custom_call.1} parent=1 // pred_fallthru
      _
    %v45 = vld [vmem:[#allocation4] sm:$0xff]
    %v46 = vld [vmem:[#allocation4 + $0x8] sm:$0xff]
    %v47 = vld [vmem:[#allocation7] sm:$0xff]
    %v48 = vld [vmem:[#allocation7 + $0x8] sm:$0xff]
    %v49 = vld [vmem:[#allocation7 + $0x10] sm:$0xff]
    %v50 = vld [vmem:[#allocation7 + $0x18] sm:$0xff]
    %v51 = vld [vmem:[%s3] sm:$0x1]
    %v53 = vlaneseq
    %v54 = vshrl.u32 %v53, 7
    %v55 = vsub.s32 0, %v54
    %v56 = vrot.slane %v51, %v55
    %vm58 = vcmask 261120
    %v60 = vsel %vm58, %v45, 0
    %v63 = vsel %vm58, %v46, 0
    %65 = vmatprep.subr.mxu0 0.0
    %66 = vmatpush1.msra.mxu0 0.0
    %67 = vmatprep.subr.mxu0 0.0
    %68 = vmatpush1.msra.mxu0 0.0
    %69 = vmatprep.subr.mxu0 0.0
    %70 = vmatpush1.msra.mxu0 0.0
    %71 = vmatprep.subr.mxu0 0.0
    %72 = vmatpush1.msra.mxu0 0.0
    %73 = vmatprep.subr.mxu0 0.0
    %74 = vmatpush1.msra.mxu0 0.0
    %75 = vmatprep.subr.mxu0 0.0
    %76 = vmatpush1.msra.mxu0 0.0
    %77 = vmatprep.subr.mxu0 0.0
    %78 = vmatpush1.msra.mxu0 0.0
    %79 = vmatprep.subr.mxu0 0.0
    %80 = vmatpush1.msra.mxu0 0.0
    %81 = vmatprep.subr.mxu0 0.0
    %82 = vmatpush1.msra.mxu0 0.0
    %83 = vmatprep.subr.mxu0 0.0
    %84 = vmatpush1.msra.mxu0 0.0
    %85 = vmatprep.subr.mxu0 0.0
    %86 = vmatpush1.msra.mxu0 0.0
    %87 = vmatprep.subr.mxu0 0.0
    %88 = vmatpush1.msra.mxu0 0.0
    %89 = vmatprep.subr.mxu0 0.0
    %90 = vmatpush1.msra.mxu0 %v50
    %91 = vmatprep.subr.mxu0 0.0
    %92 = vmatpush1.msra.mxu0 %v49
    %93 = vmatprep.subr.mxu0 0.0
    %94 = vmatpush1.msra.mxu0 %v48
    %95 = vmatprep.subr.mxu0 0.0
    %96 = vmatpush1.msra.mxu0 %v47
    %97 = vmatprep.subr.mxu0 0.0
    %98 = vmatpush2.msra.mxu0 0.0
    %99 = vmatprep.subr.mxu0 0.0
    %100 = vmatpush2.msra.mxu0 0.0
    %101 = vmatprep.subr.mxu0 0.0
    %102 = vmatpush2.msra.mxu0 0.0
    %103 = vmatprep.subr.mxu0 0.0
    %104 = vmatpush2.msra.mxu0 0.0
    %105 = vmatprep.subr.mxu0 0.0
    %106 = vmatpush2.msra.mxu0 0.0
    %107 = vmatprep.subr.mxu0 0.0
    %108 = vmatpush2.msra.mxu0 0.0
    %109 = vmatprep.subr.mxu0 0.0
    %110 = vmatpush2.msra.mxu0 0.0
    %111 = vmatprep.subr.mxu0 0.0
    %112 = vmatpush2.msra.mxu0 0.0
    %113 = vmatprep.subr.mxu0 0.0
    %114 = vmatpush2.msra.mxu0 0.0
    %115 = vmatprep.subr.mxu0 0.0
    %116 = vmatpush2.msra.mxu0 0.0
    %117 = vmatprep.subr.mxu0 0.0
    %118 = vmatpush2.msra.mxu0 0.0
    %119 = vmatprep.subr.mxu0 0.0
    %120 = vmatpush2.msra.mxu0 0.0
    %121 = vmatprep.subr.mxu0 0.0
    %122 = vmatpush2.msra.mxu0 0.0
    %123 = vmatprep.subr.mxu0 0.0
    %124 = vmatpush2.msra.mxu0 0.0
    %125 = vmatprep.subr.mxu0 0.0
    %126 = vmatpush2.msra.mxu0 0.0
    %127 = vmatprep.subr.mxu0 0.0
    %128 = vmatpush2.msra.mxu0 0.0
    %129 = vmatprep.mubr.f32.mxu0 0.0
    %130 = vmatmul.mubr.f32.gmra.mxu0 %v60
    %v131 = vpop.f32.mrf.mxu0
    %v132 = vadd.f32 %v56, %v131
    %v133 = vpop.f32.mrf.mxu0
    %134 = vmatprep.mubr.f32.mxu0 0.0
    %135 = vmatmul.mubr.f32.gmra.mxu0 %v63
    %v136 = vpop.f32.mrf.mxu0
    %v137 = vadd.f32 %v56, %v136
    %v138 = vpop.f32.mrf.mxu0
    %139 = vdwg.mxu0
    %v140 = vadd.f32 %v132, %v45
    %v141 = vadd.f32 %v137, %v46
    %142 = vst.msk [vmem:[#allocation9] sm:$0xff] %vm58, %v140
    %143 = vst.msk [vmem:[#allocation9 + $0x8] sm:$0xff] %vm58, %v141
    // Predicated region
    $region22: #{tpu_custom_call.1} parent=1 // pred_check
      _
    $region23: #{tpu_custom_call.1} parent=1 // pred_check_branch
      %145 = sbr.rel (0) target = $region25
    $region24: #{tpu_custom_call.1} parent=1 // pred_region
      %s147 = ssub.s32 256, 256
      %148 = vsyncadd [#allocation6], %s147
      %s149 = sshll.u32 [#allocation9], 4
      %s150 = int_to_ptr.vmem [resolvable:$true] %s149
      %155 = dma.vmem_to_hbm [thread:$0]  %s150, 256, %s4, [#allocation6], 128, 128, 8
    $region25: #{tpu_custom_call.1} parent=1 // pred_fallthru
      _
    // Predicated region
    $region26: #{tpu_custom_call.1} parent=1 // pred_check
      _
    $region27: #{tpu_custom_call.1} parent=1 // pred_check_branch
      %157 = sbr.rel (0) target = $region29
    $region28: #{tpu_custom_call.1} parent=1 // pred_region
      %158 = dma.done [#allocation6], 256
    $region29: #{tpu_custom_call.1} parent=1 // pred_fallthru
      _
    %159 = vsyncpa [#allocation5], 1
    %160 = vsyncpa [#allocation8], 1
    %161 = vsyncpa [#allocation6], 1

</llo_original>
